<compile_context>
chip_gen: v7x
topology: tpu7x:2x2x1
jax: 0.10.0
libtpu: 0.0.40
codegen_flags: <defaults>
</compile_context>

<pallas_src>
import functools

import jax
import jax.numpy as jnp
from jax.experimental import pallas as pl
from jax.experimental.pallas import tpu as pltpu


def _dice_partial_kernel(pred_ref, tgt_ref, out_ref, denom_acc, inter_acc, *,
                         weighted_val, eps):
    """Grid = (channel c in {0: bg, 1: fg}, D-tile k).

    pred_ref : (N, d_tile) float logits of channel c, lane-tile k
    tgt_ref  : (N, d_tile) int8 labels, lane-tile k (shared by both channels)
    out_ref  : (1, N, 1) f32 per-(channel, sample) dice loss
    denom_acc, inter_acc : (N, d_tile) f32 lane-wise partial accumulators
    """
    c = pl.program_id(0)
    k = pl.program_id(1)
    nk = pl.num_programs(1)

    @pl.when(k == 0)
    def _():
        denom_acc[...] = jnp.zeros_like(denom_acc)
        inter_acc[...] = jnp.zeros_like(inter_acc)

    # Upcast inside the kernel (bf16 predictions are accepted and read at half
    # the HBM bytes; accumulation stays f32).
    p = jax.nn.sigmoid(pred_ref[...].astype(jnp.float32))            # (N, d_tile)
    # One-hot for this channel.  Labels outside {0,1} match neither channel,
    # exactly mirroring the PyTorch reference.
    tm = (tgt_ref[...].astype(jnp.int32) == c).astype(jnp.float32)   # (N, d_tile)

    # Lane-wise partials, pure VPU work:  t**2 == t since t is 0/1.
    denom_acc[...] += p * p + tm
    inter_acc[...] += p * tm

    @pl.when(k == nk - 1)
    def _():
        denom = jnp.sum(denom_acc[...], axis=-1, keepdims=True)      # (N, 1)
        inter = jnp.sum(inter_acc[...], axis=-1, keepdims=True)      # (N, 1)
        loss = (1.0 - 2.0 * inter / jnp.maximum(denom, eps)) * weighted_val
        out_ref[0, :, :] = loss


def weighted_dice_loss_pallas(prediction, target_seg, weighted_val=1.0,
                              reduction="sum", eps=1e-8):
    n, ch, h, w = prediction.shape
    assert ch == 2, "prediction channel dim must be 2 (bg, fg)"
    d = h * w

    # int8 labels: 1 byte/pixel of HBM traffic inside the kernel.
    tgt = target_seg.reshape(n, d).astype(jnp.int8)

    # Pad the spatial axis to a multiple of 128 lanes with values that
    # contribute exactly zero (sigmoid(-1e30) == 0, label 2 matches nothing).
    pad = (-d) % 128
    d_pad = d + pad
    if pad:
        pred3 = jnp.pad(prediction.reshape(n, 2, d),
                        ((0, 0), (0, 0), (0, pad)), constant_values=-1e30)
        tgt = jnp.pad(tgt, ((0, 0), (0, pad)), constant_values=2)
        pred2 = pred3.reshape(n, 2 * d_pad)
    else:
        pred2 = prediction.reshape(n, 2 * d)          # free, contiguous reshape

    # D-tile: largest of {2048,...,128} dividing d_pad, capped so the f32
    # prediction block stays <= ~2 MiB (keeps double-buffered VMEM use far
    # below the 16/32 MiB scoped defaults on v5e/v6e/v7x).
    d_tile = 128
    for cand in (2048, 1024, 512, 256, 128):
        if d_pad % cand == 0 and n * cand * 4 <= (2 << 20):
            d_tile = cand
            break
    nk = d_pad // d_tile

    kernel = functools.partial(_dice_partial_kernel,
                               weighted_val=float(weighted_val),
                               eps=float(eps))

    per_row = pl.pallas_call(
        kernel,
        out_shape=jax.ShapeDtypeStruct((2, n, 1), jnp.float32),
        grid_spec=pltpu.PrefetchScalarGridSpec(
            num_scalar_prefetch=0,
            grid=(2, nk),
            in_specs=[
                # prediction (N, 2*d_pad): channel c occupies lane blocks
                # [c*nk, (c+1)*nk)
                pl.BlockSpec((n, d_tile), lambda c, k: (0, c * nk + k)),
                # target (N, d_pad): same lane block for both channels
                pl.BlockSpec((n, d_tile), lambda c, k: (0, k)),
            ],
            out_specs=pl.BlockSpec((1, n, 1), lambda c, k: (c, 0, 0)),
            scratch_shapes=[pltpu.VMEM((n, d_tile), jnp.float32),
                            pltpu.VMEM((n, d_tile), jnp.float32)],
        ),
        compiler_params=pltpu.CompilerParams(
            dimension_semantics=("parallel", "arbitrary")),
    )(pred2, tgt)

    per_row = per_row[:, :, 0]                 # (2, N): row 0 = bg, row 1 = fg
    if reduction == "sum":
        return per_row.sum() / n
    if reduction == "mean":
        return per_row.mean()
    # 'none' (and any other string, mirroring the reference): unreduced per-row
    # losses in PyTorch's interleaved order [bg_0, fg_0, bg_1, fg_1, ...].
    return per_row.T.reshape(-1)


def weighted_dice_loss_ref(prediction, target_seg, weighted_val=1.0,
                           reduction="sum", eps=1e-8):
    """Pure-JAX reference mirroring the PyTorch code."""
    n, _, h, w = prediction.shape
    t_fg = (target_seg == 1)
    t_bg = (target_seg == 0)
    tgt = jnp.stack([t_bg, t_fg], axis=1).astype(jnp.float32)    # (N, 2, H, W)
    p = jax.nn.sigmoid(prediction.astype(jnp.float32)).reshape(-1, h * w)
    tgt = tgt.reshape(-1, h * w)
    loss_part = (p ** 2).sum(-1) + (tgt ** 2).sum(-1)
    loss = 1.0 - 2.0 * (tgt * p).sum(-1) / jnp.maximum(loss_part, eps)
    loss = loss * weighted_val
    if reduction == "sum":
        return loss.sum() / n
    if reduction == "mean":
        return loss.mean()
    return loss


if __name__ == "__main__":
    key = jax.random.PRNGKey(0)
    k1, k2 = jax.random.split(key)

    n, h, w = 2, 16, 16
    prediction = jax.random.normal(k1, (n, 2, h, w), dtype=jnp.float32)
    target_seg = jax.random.bernoulli(k2, 0.4, (n, h, w)).astype(jnp.int32)

    out_sum = jax.block_until_ready(
        weighted_dice_loss_pallas(prediction, target_seg, 1.0, "sum"))
    ref_sum = weighted_dice_loss_ref(prediction, target_seg, 1.0, "sum")
    assert jnp.allclose(out_sum, ref_sum, rtol=1e-5, atol=1e-5), (out_sum, ref_sum)

    out_mean = jax.block_until_ready(
        weighted_dice_loss_pallas(prediction, target_seg, 1.0, "mean"))
    ref_mean = weighted_dice_loss_ref(prediction, target_seg, 1.0, "mean")
    assert jnp.allclose(out_mean, ref_mean, rtol=1e-5, atol=1e-5), (out_mean, ref_mean)

    out_none = jax.block_until_ready(
        weighted_dice_loss_pallas(prediction, target_seg, 1.0, "none"))
    ref_none = weighted_dice_loss_ref(prediction, target_seg, 1.0, "none")
    assert out_none.shape == ref_none.shape
    assert jnp.allclose(out_none, ref_none, rtol=1e-5, atol=1e-5), (out_none, ref_none)

    print("KERNEL_OK")
</pallas_src>

<mosaic_0001>
module attributes {stable_mosaic.version = 11 : i64} {
  func.func @_dice_partial_kernel(%arg0: i32, %arg1: i32, %arg2: memref<2x256xf32, #tpu.memory_space<vmem>>, %arg3: memref<2x256xi8, #tpu.memory_space<vmem>>, %arg4: memref<1x2x1xf32, #tpu.memory_space<vmem>>, %arg5: memref<2x256xf32, #tpu.memory_space<vmem>>, %arg6: memref<2x256xf32, #tpu.memory_space<vmem>>) attributes {dimension_semantics = [#tpu.dimension_semantics<parallel>, #tpu.dimension_semantics<arbitrary>], iteration_bounds = array<i64: 2, 1>, scalar_prefetch = 0 : i64, scratch_operands = 2 : i64, tpu.core_type = #tpu.core_type<tc>, window_params = [{transform_indices = @transform_0, window_bounds = array<i64: 2, 256>}, {transform_indices = @transform_1, window_bounds = array<i64: 2, 256>}, {transform_indices = @transform_2, window_bounds = array<i64: 1, 2, 1>}]} {
    %c0_i32 = arith.constant 0 : i32
    %0 = arith.cmpi eq, %arg1, %c0_i32 : i32
    %1 = arith.extui %0 : i1 to i32
    %c0_i32_0 = arith.constant 0 : i32
    %2 = arith.cmpi ne, %1, %c0_i32_0 : i32
    scf.if %2 {
      %cst_14 = arith.constant 0.000000e+00 : f32
      %27 = vector.broadcast %cst_14 : f32 to vector<2x256xf32>
      %c0_15 = arith.constant 0 : index
      %c0_16 = arith.constant 0 : index
      %28 = vector.load %arg5[%c0_15, %c0_16] : memref<2x256xf32, #tpu.memory_space<vmem>>, vector<2x256xf32>
      tpu.vector_store %arg5[%c0_15, %c0_16], %27 {strides = array<i32>} : memref<2x256xf32, #tpu.memory_space<vmem>>, vector<2x256xf32>,
      %cst_17 = arith.constant 0.000000e+00 : f32
      %29 = vector.broadcast %cst_17 : f32 to vector<2x256xf32>
      %c0_18 = arith.constant 0 : index
      %c0_19 = arith.constant 0 : index
      %30 = vector.load %arg6[%c0_18, %c0_19] : memref<2x256xf32, #tpu.memory_space<vmem>>, vector<2x256xf32>
      tpu.vector_store %arg6[%c0_18, %c0_19], %29 {strides = array<i32>} : memref<2x256xf32, #tpu.memory_space<vmem>>, vector<2x256xf32>,
    } else {
    }
    %c0 = arith.constant 0 : index
    %c0_1 = arith.constant 0 : index
    %3 = vector.load %arg2[%c0, %c0_1] : memref<2x256xf32, #tpu.memory_space<vmem>>, vector<2x256xf32>
    %4 = arith.negf %3 : vector<2x256xf32>
    %5 = math.exp %4 : vector<2x256xf32>
    %cst = arith.constant 1.000000e+00 : f32
    %6 = vector.broadcast %cst : f32 to vector<2x256xf32>
    %7 = arith.addf %6, %5 : vector<2x256xf32>
    %8 = arith.divf %6, %7 : vector<2x256xf32>
    %c0_2 = arith.constant 0 : index
    %c0_3 = arith.constant 0 : index
    %9 = vector.load %arg3[%c0_2, %c0_3] : memref<2x256xi8, #tpu.memory_space<vmem>>, vector<2x256xi8>
    %10 = arith.extsi %9 : vector<2x256xi8> to vector<2x256xi32>
    %11 = vector.broadcast %arg0 : i32 to vector<2x256xi32>
    %12 = arith.cmpi eq, %10, %11 : vector<2x256xi32>
    %13 = arith.extui %12 : vector<2x256xi1> to vector<2x256xi32>
    %14 = arith.sitofp %13 : vector<2x256xi32> to vector<2x256xf32>
    %c0_4 = arith.constant 0 : index
    %c0_5 = arith.constant 0 : index
    %15 = vector.load %arg5[%c0_4, %c0_5] : memref<2x256xf32, #tpu.memory_space<vmem>>, vector<2x256xf32>
    %16 = arith.mulf %8, %8 : vector<2x256xf32>
    %17 = arith.addf %16, %14 : vector<2x256xf32>
    %18 = arith.addf %15, %17 : vector<2x256xf32>
    %c0_6 = arith.constant 0 : index
    %c0_7 = arith.constant 0 : index
    %19 = vector.load %arg5[%c0_6, %c0_7] : memref<2x256xf32, #tpu.memory_space<vmem>>, vector<2x256xf32>
    tpu.vector_store %arg5[%c0_6, %c0_7], %18 {strides = array<i32>} : memref<2x256xf32, #tpu.memory_space<vmem>>, vector<2x256xf32>,
    %c0_8 = arith.constant 0 : index
    %c0_9 = arith.constant 0 : index
    %20 = vector.load %arg6[%c0_8, %c0_9] : memref<2x256xf32, #tpu.memory_space<vmem>>, vector<2x256xf32>
    %21 = arith.mulf %8, %14 : vector<2x256xf32>
    %22 = arith.addf %20, %21 : vector<2x256xf32>
    %c0_10 = arith.constant 0 : index
    %c0_11 = arith.constant 0 : index
    %23 = vector.load %arg6[%c0_10, %c0_11] : memref<2x256xf32, #tpu.memory_space<vmem>>, vector<2x256xf32>
    tpu.vector_store %arg6[%c0_10, %c0_11], %22 {strides = array<i32>} : memref<2x256xf32, #tpu.memory_space<vmem>>, vector<2x256xf32>,
    %c0_i32_12 = arith.constant 0 : i32
    %24 = arith.cmpi eq, %arg1, %c0_i32_12 : i32
    %25 = arith.extui %24 : i1 to i32
    %c0_i32_13 = arith.constant 0 : i32
    %26 = arith.cmpi ne, %25, %c0_i32_13 : i32
    scf.if %26 {
      %c0_14 = arith.constant 0 : index
      %c0_15 = arith.constant 0 : index
      %27 = vector.load %arg5[%c0_14, %c0_15] : memref<2x256xf32, #tpu.memory_space<vmem>>, vector<2x256xf32>
      %cst_16 = arith.constant dense<0.000000e+00> : vector<2xf32>
      %28 = vector.multi_reduction <add>, %27, %cst_16 [1] : vector<2x256xf32> to vector<2xf32>
      %29 = vector.shape_cast %28 : vector<2xf32> to vector<2x1xf32>
      %c0_17 = arith.constant 0 : index
      %c0_18 = arith.constant 0 : index
      %30 = vector.load %arg6[%c0_17, %c0_18] : memref<2x256xf32, #tpu.memory_space<vmem>>, vector<2x256xf32>
      %cst_19 = arith.constant dense<0.000000e+00> : vector<2xf32>
      %31 = vector.multi_reduction <add>, %30, %cst_19 [1] : vector<2x256xf32> to vector<2xf32>
      %32 = vector.shape_cast %31 : vector<2xf32> to vector<2x1xf32>
      %cst_20 = arith.constant 2.000000e+00 : f32
      %33 = vector.broadcast %cst_20 : f32 to vector<2x1xf32>
      %34 = arith.mulf %33, %32 : vector<2x1xf32>
      %cst_21 = arith.constant 9.99999993E-9 : f32
      %35 = vector.broadcast %cst_21 : f32 to vector<2x1xf32>
      %36 = arith.maximumf %29, %35 : vector<2x1xf32>
      %37 = arith.divf %34, %36 : vector<2x1xf32>
      %cst_22 = arith.constant 1.000000e+00 : f32
      %38 = vector.broadcast %cst_22 : f32 to vector<2x1xf32>
      %39 = arith.subf %38, %37 : vector<2x1xf32>
      %cst_23 = arith.constant 1.000000e+00 : f32
      %40 = vector.broadcast %cst_23 : f32 to vector<2x1xf32>
      %41 = arith.mulf %39, %40 : vector<2x1xf32>
      %c0_24 = arith.constant 0 : index
      %c0_25 = arith.constant 0 : index
      %c0_26 = arith.constant 0 : index
      %42 = vector.load %arg4[%c0_24, %c0_25, %c0_26] : memref<1x2x1xf32, #tpu.memory_space<vmem>>, vector<1x2x1xf32>
      %43 = vector.shape_cast %42 : vector<1x2x1xf32> to vector<2x1xf32>
      %44 = vector.shape_cast %41 : vector<2x1xf32> to vector<1x2x1xf32>
      tpu.vector_store %arg4[%c0_24, %c0_25, %c0_26], %44 {strides = array<i32>} : memref<1x2x1xf32, #tpu.memory_space<vmem>>, vector<1x2x1xf32>,
    } else {
    }
    return
  }
  func.func @transform_0(%arg0: i32, %arg1: i32) -> (i32, i32) {
    %c1_i32 = arith.constant 1 : i32
    %0 = arith.muli %arg0, %c1_i32 : i32
    %1 = arith.addi %0, %arg1 : i32
    %c0_i32 = arith.constant 0 : i32
    %c0_i32_0 = arith.constant 0 : i32
    return %c0_i32, %1 : i32, i32
  }
  func.func @transform_1(%arg0: i32, %arg1: i32) -> (i32, i32) {
    %c0_i32 = arith.constant 0 : i32
    %c0_i32_0 = arith.constant 0 : i32
    return %c0_i32, %arg1 : i32, i32
  }
  func.func @transform_2(%arg0: i32, %arg1: i32) -> (i32, i32, i32) {
    %c0_i32 = arith.constant 0 : i32
    %c0_i32_0 = arith.constant 0 : i32
    %c0_i32_1 = arith.constant 0 : i32
    return %arg0, %c0_i32, %c0_i32_0 : i32, i32, i32
  }
}

</mosaic_0001>

<llo_original>
// kernel: tpu_custom_call.1
$region0: #{tpu_custom_call.1}
  #allocation0 [shape = 'u32[]', space=smem, size = 0x4, offset = 0x4, fixed_abs, tag = 'smem constant byte address 0x4 - core index']
  #allocation1 [shape = 'u32[144,128]{1,0:T(1,128)}', space=vmem, size = 0x12000, scoped, tag = 'internal scratch']
  #allocation2 [shape = 'f32[2,256]{1,0:T(2,128)}', space=vmem, size = 0x800, scoped, tag = 'scratch operand']
  #allocation3 [shape = 'f32[2,256]{1,0:T(2,128)}', space=vmem, size = 0x800, scoped, tag = 'scratch operand']
  %s0 = inlined_call_operand.hbm [shape: f32[2,512], index: 0, kind: input, shape index: {}]
  %s1 = inlined_call_operand.vmem [shape: s8[2,256], index: 1, kind: input, shape index: {}]
  %s2 = inlined_call_operand.vmem [shape: f32[2,2,1], index: 2, kind: output, shape index: {}]
  %s3 = sld [smem:[#allocation0]]
  $region53: #{tpu_custom_call.1} parent=0
    _
  %s5 = ssub.s32 1, %s3
  %s6 = scalar_select 0, %s5, %s3
  $region1: #{tpu_custom_call.1} parent=0
    #allocation4 [shape = 'u8[4096]{0}', space=vmem, size = 0x1000, scoped, tag = 'input window, operand 0']
    #allocation5 [shape = 's32[2]{0}', space=sflag, size = 0x8, scoped, tag = 'scoped memory for tpu_custom_call.1']
    %7 = vsyncpa [#allocation5], 0
    %s8 = scalar_lea.sflag [#allocation5], 1
    %9 = vsyncpa %s8, 0
    loop: start=0, step=1, limit=4
    $region2: #{tpu_custom_call.1} parent=1 // loop_pre_header
      _
    $region3: #{tpu_custom_call.1} parent=1 // loop_header
      %s11 = sphi 0, %s15
      %p12 = scmp.ge.s32.totalorder %s11, 4
      %s18 = sphi 0, %s30
      %s19 = sphi 0, %s26
      %s20 = sphi 0, %s18
      %s21 = sphi 0, %s19
      %s22 = sphi 0, %s20
      %s23 = sphi 0, %s21
      %s35 = sphi 0, %s37
      %s38 = sphi 0, %s35
      %s39 = sphi 0, %s38
      %s55 = sphi 0, %s39
      %s61 = sphi 0, %s63
      %s64 = sphi 0, %s61
      %s65 = sphi 0, %s64
      %s81 = sphi 0, %s65
      %s87 = sphi 0, %s89
      %s90 = sphi 0, %s87
      %s91 = sphi 0, %s90
      %s107 = sphi 0, %s91
    $region4: #{tpu_custom_call.1} parent=1 // loop_header_branch
      %14 = sbr.rel (%p12) target = $region8
    $region5: #{tpu_custom_call.1} parent=1 // loop_body
      %s16 = ssub.s32 %s11, 1
      %s17 = ssub.s32 %s11, 2
      %s24 = sadd.s32 1, %s19
      %p25 = scmp.ge.s32.totalorder %s24, 1
      %s26 = scalar_select %p25, 0, %s24
      %s27 = sadd.s32 1, %s18
      %s28 = scalar_select %p25, %s27, %s18
      %p29 = scmp.ge.s32.totalorder %s28, 2
      %s30 = scalar_select %p29, 0, %s28
      %s31 = sadd.s32 %s18, %s19
      %s32 = sadd.s32 %s30, %s26
      %s33 = ssub.s32 %s31, %s32
      %p34 = scmp.eq.s32.totalorder %s33, 0
      %s36 = sadd.s32 %s35, 1
      %s37 = scalar_select %p34, %s35, %s36
      %p40 = pneg %p34
      %p41 = scmp.eq.s32.totalorder %s11, 1
      %p42 = por %p40, %p41
      %p43 = scmp.ne.s32.totalorder %s35, %s38
      %p44 = scmp.eq.s32.totalorder %s11, 0
      %p45 = por %p43, %p44
      %p46 = scmp.ne.s32.totalorder %s35, %s38
      %p47 = scmp.eq.s32.totalorder %s16, 1
      %p48 = por %p46, %p47
      %p49 = scmp.ne.s32.totalorder %s38, %s39
      %p50 = scmp.eq.s32.totalorder %s16, 0
      %p51 = por %p49, %p50
      %p52 = scmp.ne.s32.totalorder %s38, %s39
      %p53 = scmp.eq.s32.totalorder %s17, 1
      %p54 = por %p52, %p53
      %p56 = scmp.ne.s32.totalorder %s39, %s55
      %p57 = scmp.eq.s32.totalorder %s17, 0
      %p58 = por %p56, %p57
      %s59 = ssub.s32 %s19, %s26
      %p60 = scmp.eq.s32.totalorder %s59, 0
      %s62 = sadd.s32 %s61, 1
      %s63 = scalar_select %p60, %s61, %s62
      %p66 = pneg %p60
      %p67 = scmp.eq.s32.totalorder %s11, 1
      %p68 = por %p66, %p67
      %p69 = scmp.ne.s32.totalorder %s61, %s64
      %p70 = scmp.eq.s32.totalorder %s11, 0
      %p71 = por %p69, %p70
      %p72 = scmp.ne.s32.totalorder %s61, %s64
      %p73 = scmp.eq.s32.totalorder %s16, 1
      %p74 = por %p72, %p73
      %p75 = scmp.ne.s32.totalorder %s64, %s65
      %p76 = scmp.eq.s32.totalorder %s16, 0
      %p77 = por %p75, %p76
      %p78 = scmp.ne.s32.totalorder %s64, %s65
      %p79 = scmp.eq.s32.totalorder %s17, 1
      %p80 = por %p78, %p79
      %p82 = scmp.ne.s32.totalorder %s65, %s81
      %p83 = scmp.eq.s32.totalorder %s17, 0
      %p84 = por %p82, %p83
      %s85 = ssub.s32 %s18, %s30
      %p86 = scmp.eq.s32.totalorder %s85, 0
      %s88 = sadd.s32 %s87, 1
      %s89 = scalar_select %p86, %s87, %s88
      %p92 = pneg %p86
      %p93 = scmp.eq.s32.totalorder %s11, 1
      %p94 = por %p92, %p93
      %p95 = scmp.ne.s32.totalorder %s87, %s90
      %p96 = scmp.eq.s32.totalorder %s11, 0
      %p97 = por %p95, %p96
      %p98 = scmp.ne.s32.totalorder %s87, %s90
      %p99 = scmp.eq.s32.totalorder %s16, 1
      %p100 = por %p98, %p99
      %p101 = scmp.ne.s32.totalorder %s90, %s91
      %p102 = scmp.eq.s32.totalorder %s16, 0
      %p103 = por %p101, %p102
      %p104 = scmp.ne.s32.totalorder %s90, %s91
      %p105 = scmp.eq.s32.totalorder %s17, 1
      %p106 = por %p104, %p105
      %p108 = scmp.ne.s32.totalorder %s91, %s107
      %p109 = scmp.eq.s32.totalorder %s17, 0
      %p110 = por %p108, %p109
      %p111 = scmp.le.s32.totalorder 1, %s11
      %p112 = scmp.lt.s32.totalorder %s11, 3
      %p113 = pnand %p111, %p112
      %p114 = pneg %p113
      // Predicated region
      $region9: #{tpu_custom_call.1} parent=5 // pred_check
        _
      $region10: #{tpu_custom_call.1} parent=5 // pred_check_branch
        %116 = sbr.rel (%p113) target = $region12
      $region11: #{tpu_custom_call.1} parent=5 // pred_region
        %s117 = ssub.s32 %s11, 1
        // Predicated region
        $region13: #{tpu_custom_call.1} parent=11 // pred_check
          %p118 = pneg %p77
        $region14: #{tpu_custom_call.1} parent=11 // pred_check_branch
          %120 = sbr.rel (%p118) target = $region16
        $region15: #{tpu_custom_call.1} parent=11 // pred_region
          %s121 = smul.u32 2, %s21
          %p122 = scmp.lt.s32.totalorder %s121, 1
          %s123 = scalar_select %p122, %s121, 1
          %s124 = scalar_lea.vmem %s1, %s123
          %s125 = smul.u32 2, %s21
        $region16: #{tpu_custom_call.1} parent=11 // pred_fallthru
          _
      $region12: #{tpu_custom_call.1} parent=5 // pred_fallthru
        _
      %p126 = scmp.lt.s32.totalorder %s11, 2
      // Predicated region
      $region17: #{tpu_custom_call.1} parent=5 // pred_check
        %p127 = pneg %p126
      $region18: #{tpu_custom_call.1} parent=5 // pred_check_branch
        %129 = sbr.rel (%p127) target = $region20
      $region19: #{tpu_custom_call.1} parent=5 // pred_region
        // Predicated region
        $region21: #{tpu_custom_call.1} parent=19 // pred_check
          %p130 = pneg %p45
        $region22: #{tpu_custom_call.1} parent=19 // pred_check_branch
          %132 = sbr.rel (%p130) target = $region24
        $region23: #{tpu_custom_call.1} parent=19 // pred_region
          %s133 = sand.u32 %s35, 1
          %s134 = scalar_lea.sflag [#allocation5], %s133
          %s135 = sand.u32 %s35, 1
          %s136 = smul.addr %s135, 4
          %s137 = scalar_lea.vmem [#allocation4], %s136
          %s138 = sadd.s32 %s18, %s19
          %s139 = smul.u32 2, %s138
          %s141 = ssub.s32 64, 64
          %142 = vsyncadd %s134, %s141
          %s143 = smul.addr %s139, 32
          %s144 = scalar_lea.hbm %s0, %s143
          %s146 = sshll.u32 %s137, 4
          %s147 = int_to_ptr.vmem [resolvable:$true] %s146
          %149 = dma.hbm_to_vmem [thread:$0]  %s144, 64, %s147, %s134
        $region24: #{tpu_custom_call.1} parent=19 // pred_fallthru
          _
      $region20: #{tpu_custom_call.1} parent=5 // pred_fallthru
        _
      %p150 = scmp.le.s32.totalorder 1, %s11
      %p151 = scmp.lt.s32.totalorder %s11, 3
      %p152 = pnand %p150, %p151
      %p153 = pneg %p152
      // Predicated region
      $region25: #{tpu_custom_call.1} parent=5 // pred_check
        _
      $region26: #{tpu_custom_call.1} parent=5 // pred_check_branch
        %155 = sbr.rel (%p152) target = $region28
      $region27: #{tpu_custom_call.1} parent=5 // pred_region
        %s156 = ssub.s32 %s11, 1
        %s157 = sand.u32 %s38, 1
        %s158 = scalar_lea.sflag [#allocation5], %s157
        %s159 = sand.u32 %s38, 1
        %s160 = smul.addr %s159, 4
        %s161 = scalar_lea.vmem [#allocation4], %s160
        // Predicated region
        $region29: #{tpu_custom_call.1} parent=27 // pred_check
          %p162 = pneg %p51
        $region30: #{tpu_custom_call.1} parent=27 // pred_check_branch
          %164 = sbr.rel (%p162) target = $region32
        $region31: #{tpu_custom_call.1} parent=27 // pred_region
          %165 = dma.done %s158, 64
        $region32: #{tpu_custom_call.1} parent=27 // pred_fallthru
          _
        %s166 = sand.u32 %s38, 1
        %s167 = scalar_lea.sflag [#allocation5], %s166
        %s168 = sand.u32 %s38, 1
        %s169 = smul.addr %s168, 4
        %s170 = scalar_lea.vmem [#allocation4], %s169
        %p171 = pneg %p51
        %p172 = pneg %p48
        %s173 = smul.u32 2, %s21
        %p174 = scmp.lt.s32.totalorder %s173, 1
        %s175 = scalar_select %p174, %s173, 1
        %s176 = scalar_lea.vmem %s1, %s175
        %p177 = pneg %p77
        %p178 = pneg %p74
        %p179 = pneg %p103
        %p180 = pneg %p100
        %p181 = scmp.lt.s32.totalorder %s20, 1
        %s182 = scalar_select %p181, %s20, 1
        %s183 = smul.addr %s182, 2
        %s184 = scalar_lea.vmem %s2, %s183
        %s185 = sadd.s32 %s20, %s21
        %s186 = smul.u32 2, %s185
        %s187 = smul.u32 2, %s21
        %p188 = scmp.lt.s32.totalorder %s187, 1
        %s189 = scalar_select %p188, %s187, 1
        %s190 = scalar_lea.vmem %s1, %s189
        %s191 = smul.u32 2, %s21
        %p192 = scmp.lt.s32.totalorder %s20, 1
        %s193 = scalar_select %p192, %s20, 1
        %s194 = smul.addr %s193, 2
        %s195 = scalar_lea.vmem %s2, %s194
        %p196 = scmp.eq.s32.totalorder %s21, 0
        // Predicated region
        $region33: #{tpu_custom_call.1} parent=27 // pred_check
          %p197 = pneg %p196
        $region34: #{tpu_custom_call.1} parent=27 // pred_check_branch
          %199 = sbr.rel (%p197) target = $region36
        $region35: #{tpu_custom_call.1} parent=27 // pred_region
          %200 = vst [vmem:[#allocation2] sm:$0xf] 0.0
          %201 = vst [vmem:[#allocation3] sm:$0xf] 0.0
        $region36: #{tpu_custom_call.1} parent=27 // pred_fallthru
          _
        %v202 = vld [vmem:[%s161] sm:$0xf]
        %v203 = vxor.u32 %v202, 2147483648
        %v204 = vmul.f32 %v203, 1.442695
        %v205 = vpow.pop %v204
        %v206 = vadd.f32 %v205, 1.0
        %v207 = vrcp.pop %v206
        %v208 = vmul.f32 1.0, %v207
        %v209 = vld [vmem:[%s190] sm:$0x3]
        %v210 = vunpack.c.0.s8 %v209
        %v211 = vstv %s20
        %vm212 = vcmp.eq.s32.totalorder %v210, %v211
        %v213 = vsel %vm212, 1, 0
        %v214 = vcvt.s32.f32 %v213
        %v215 = vld [vmem:[#allocation2] sm:$0xf]
        %v216 = vmul.f32 %v208, %v208
        %v219 = vunpack.c.l.s4 1983009808
        %v220 = vunpack.c.0.s8 %v219
        %v221 = vlaneseq
        %v222 = vshrl.u32 %v221, 7
        %v223 = vsub.s32 %v220, %v222
        %v224 = vrot.slane %v214, %v223
        %v226 = vadd.f32 %v216, %v224
        %v227 = vadd.f32 %v215, %v226
        %228 = vst [vmem:[#allocation2] sm:$0xf] %v227
        %v229 = vld [vmem:[#allocation3] sm:$0xf]
        %v230 = vmul.f32 %v208, %v224
        %v231 = vadd.f32 %v229, %v230
        %232 = vst [vmem:[#allocation3] sm:$0xf] %v231
        // Predicated region
        $region37: #{tpu_custom_call.1} parent=27 // pred_check
          %p233 = pneg %p196
        $region38: #{tpu_custom_call.1} parent=27 // pred_check_branch
          %235 = sbr.rel (%p233) target = $region40
        $region39: #{tpu_custom_call.1} parent=27 // pred_region
          %v236 = vld [vmem:[#allocation2] sm:$0xf]
          %v239 = vunpack.c.l.s4 1983009808
          %v240 = vunpack.c.0.s8 %v239
          %v241 = vlaneseq
          %v242 = vshrl.u32 %v241, 7
          %v243 = vsub.s32 %v240, %v242
          %v244 = vrot.slane %v236, %v243
          %v245 = vcombine.high %v244, %v244
          %vm248 = vcmask 1041408
          %v249 = vsel %vm248, %v244, 0.0
          %v250 = vsel %vm248, %v245, 0.0
          %v251 = vadd.f32 %v249, %v250
          %252 = vadd.xlane.f32.xlu0 %v251
          %v253 = vpop.xlane.xlu0 %252
          %v254 = vld [vmem:[#allocation3] sm:$0xf]
          %v257 = vunpack.c.l.s4 1983009808
          %v258 = vunpack.c.0.s8 %v257
          %v259 = vlaneseq
          %v260 = vshrl.u32 %v259, 7
          %v261 = vsub.s32 %v258, %v260
          %v262 = vrot.slane %v254, %v261
          %v263 = vcombine.high %v262, %v262
          %v266 = vsel %vm248, %v262, 0.0
          %v267 = vsel %vm248, %v263, 0.0
          %v268 = vadd.f32 %v266, %v267
          %269 = vadd.xlane.f32.xlu0 %v268
          %v270 = vpop.xlane.xlu0 %269
          %v271 = vmul.f32 %v270, 2.0
          %v272 = vmax.f32 %v253, 1e-08
          %v273 = vrcp.pop %v272
          %v274 = vmul.f32 %v271, %v273
          %v275 = vsub.f32 1.0, %v274
          %vm276 = vcmask 1024
          %277 = vst.msk [vmem:[%s195] sm:$0x3] %vm276, %v275
        $region40: #{tpu_custom_call.1} parent=27 // pred_fallthru
          _
        %p278 = scmp.lt.s32.totalorder %s20, 1
        %s279 = scalar_select %p278, %s20, 1
        %s280 = smul.addr %s279, 2
        %s281 = scalar_lea.vmem %s2, %s280
        // Predicated region
        $region41: #{tpu_custom_call.1} parent=27 // pred_check
          %p282 = pneg %p100
        $region42: #{tpu_custom_call.1} parent=27 // pred_check_branch
          %284 = sbr.rel (%p282) target = $region44
        $region43: #{tpu_custom_call.1} parent=27 // pred_region
          _
        $region44: #{tpu_custom_call.1} parent=27 // pred_fallthru
          _
      $region28: #{tpu_custom_call.1} parent=5 // pred_fallthru
        _
      %p285 = scmp.le.s32.totalorder 2, %s11
      // Predicated region
      $region45: #{tpu_custom_call.1} parent=5 // pred_check
        %p286 = pneg %p285
      $region46: #{tpu_custom_call.1} parent=5 // pred_check_branch
        %288 = sbr.rel (%p286) target = $region48
      $region47: #{tpu_custom_call.1} parent=5 // pred_region
        %s289 = ssub.s32 %s11, 2
        // Predicated region
        $region49: #{tpu_custom_call.1} parent=47 // pred_check
          %p290 = pneg %p106
        $region50: #{tpu_custom_call.1} parent=47 // pred_check_branch
          %292 = sbr.rel (%p290) target = $region52
        $region51: #{tpu_custom_call.1} parent=47 // pred_region
          %p293 = scmp.lt.s32.totalorder %s22, 1
          %s294 = scalar_select %p293, %s22, 1
          %s295 = smul.addr %s294, 2
          %s296 = scalar_lea.vmem %s2, %s295
        $region52: #{tpu_custom_call.1} parent=47 // pred_fallthru
          _
      $region48: #{tpu_custom_call.1} parent=5 // pred_fallthru
        _
    $region6: #{tpu_custom_call.1} parent=1 // loop_footer
      %s15 = sadd.s32 1, %s11
    $region7: #{tpu_custom_call.1} parent=1 // loop_footer_branch
      %10 = sbr.rel target = $region3
    $region8: #{tpu_custom_call.1} parent=1 // loop_exit
      _
    %297 = vsyncpa [#allocation5], 1
    %s298 = scalar_lea.sflag [#allocation5], 1
    %299 = vsyncpa %s298, 1

</llo_original>
